<compile_context>
chip_gen: v7x
topology: tpu7x:2x2x1
jax: 0.10.0
libtpu: 0.0.40
codegen_flags: <defaults>
</compile_context>

<pallas_src>
import functools

import jax
import jax.numpy as jnp
from jax.experimental import pallas as pl
from jax.experimental.pallas import tpu as pltpu


LANE = 128  # TPU lane width — pad all layer output dims (and input_dim) to this.


def _round_up(x, m):
    return ((x + m - 1) // m) * m


# ----------------------------- Pallas kernel ------------------------------ #
def _fused_mlp_kernel(*refs, n_layers):
    """Fused multi-head MLP on one batch tile.

    refs (n_layers > 1): x_ref, w0_ref, wrest_ref, b_ref, o_ref
    refs (n_layers == 1): x_ref, w0_ref, b_ref, o_ref
      x_ref     : (block_b, in_pad)      f32
      w0_ref    : (in_pad, W)            bf16, heads concatenated along out dim
      wrest_ref : (n_layers-1, W, W)     bf16, block-diagonal per head
      b_ref     : (n_layers, W)          f32, one row per layer
      o_ref     : (block_b, W)           f32, lane-dense (W multiple of 128)
    """
    if n_layers > 1:
        x_ref, w0_ref, wrest_ref, b_ref, o_ref = refs
    else:
        x_ref, w0_ref, b_ref, o_ref = refs
        wrest_ref = None

    b = b_ref[...]  # (n_layers, W) f32 — loaded once

    # Layer 0: bf16 x bf16 on the MXU, f32 accumulation; bias/ReLU in f32.
    h = jnp.dot(x_ref[...].astype(jnp.bfloat16), w0_ref[...],
                preferred_element_type=jnp.float32)
    h = h + b[0:1, :]  # static row slice, broadcasts over the batch rows

    if n_layers > 1:
        h = jnp.maximum(h, 0.0)  # Dropout is identity in eval; ReLU only
        for j in range(1, n_layers):
            h = jnp.dot(h.astype(jnp.bfloat16), wrest_ref[j - 1],
                        preferred_element_type=jnp.float32)
            h = h + b[j:j + 1, :]
            if j < n_layers - 1:
                h = jnp.maximum(h, 0.0)

    o_ref[...] = h.astype(o_ref.dtype)


def _choose_block_b(B, in_pad, W, weight_bytes,
                    preferred=512, vmem_budget=40 << 20):
    """Largest batch tile that (a) is a 256-row multiple (v6e/v7x MXU rows),
    (b) fits the double-buffered x/out tiles + single-buffered weights in a
    v7x-safe VMEM budget, and (c) leaves >= 2 grid steps for megacore when
    the batch is big enough."""
    if B <= 256:
        # Single small tile; keep it sublane-aligned (multiple of 8).
        return max(8, _round_up(B, 8))
    bb = preferred
    while bb > 256 and weight_bytes + 2 * bb * (in_pad + W) * 4 > vmem_budget:
        bb -= 256
    half = _round_up(pl.cdiv(B, 2), 256)  # >=2 grid steps -> both v7x TCs busy
    bb = min(bb, half)
    return max(256, bb)


def fused_mlp_pallas(x, w0, w_rest, biases):
    """x: (B, in_dim) f32; w0: (in_pad, W) bf16; w_rest: (L-1, W, W) bf16 or None;
    biases: (L, W) f32  ->  (B, W) f32."""
    B, in_dim = x.shape
    in_pad, W = w0.shape
    L = biases.shape[0]

    # Lane-pad the input columns (layer-0 weight rows are already zero-padded).
    if in_dim != in_pad:
        x = jnp.pad(x, ((0, 0), (0, in_pad - in_dim)))

    weight_bytes = (w0.size * w0.dtype.itemsize
                    + (0 if w_rest is None else w_rest.size * w_rest.dtype.itemsize)
                    + biases.size * biases.dtype.itemsize)
    block_b = _choose_block_b(B, in_pad, W, weight_bytes)

    # Zero-pad the batch to a multiple of block_b (masked tail handled by slicing).
    B_pad = _round_up(B, block_b)
    if B_pad != B:
        x = jnp.pad(x, ((0, B_pad - B), (0, 0)))
    grid = (B_pad // block_b,)

    # Grid-invariant blocks: single-buffer to halve resident weight VMEM.
    inv = pl.Buffered(1)
    in_specs = [pl.BlockSpec((block_b, in_pad), lambda i: (i, 0))]
    inputs = [x]
    in_specs.append(pl.BlockSpec(w0.shape, lambda i: (0, 0), pipeline_mode=inv))
    inputs.append(w0)
    if w_rest is not None:
        in_specs.append(
            pl.BlockSpec(w_rest.shape, lambda i: (0, 0, 0), pipeline_mode=inv))
        inputs.append(w_rest)
    in_specs.append(pl.BlockSpec(biases.shape, lambda i: (0, 0), pipeline_mode=inv))
    inputs.append(biases)

    # Explicit VMEM limit sized from the actual footprint (v7x has 64 MiB total).
    est = weight_bytes + 2 * block_b * (in_pad + W) * 4 + (4 << 20)
    vmem_limit = int(max(32 << 20, min(64 << 20, est + (est >> 2))))

    y = pl.pallas_call(
        functools.partial(_fused_mlp_kernel, n_layers=L),
        out_shape=jax.ShapeDtypeStruct((B_pad, W), jnp.float32),
        grid=grid,
        in_specs=in_specs,
        out_specs=pl.BlockSpec((block_b, W), lambda i: (i, 0)),
        compiler_params=pltpu.CompilerParams(
            dimension_semantics=("parallel",),
            vmem_limit_bytes=vmem_limit),
    )(*inputs)
    return y[:B] if B_pad != B else y


# --------------------------- parameter creation ---------------------------- #
def init_linear_params(key, in_dim, out_dim):
    """Deterministic init matching nn.Linear shapes: W (out,in), b (out,)."""
    kw, kb = jax.random.split(key)
    bound = 1.0 / jnp.sqrt(jnp.float32(in_dim))
    w = jax.random.uniform(kw, (out_dim, in_dim), jnp.float32, -bound, bound)
    b = jax.random.uniform(kb, (out_dim,), jnp.float32, -bound, bound)
    return w, b


def init_classifier_head(key, n_class, input_dim, hidden_dims):
    """Params for one ClassifierHead.nonlinear_head (list of (W, b) per Linear)."""
    params = []
    in_dim = input_dim
    keys = jax.random.split(key, len(hidden_dims) + 1)
    for k, dim in zip(keys[:-1], hidden_dims):
        params.append(init_linear_params(k, in_dim, dim))
        in_dim = dim
    params.append(init_linear_params(keys[-1], in_dim, n_class))
    return params


def init_multi_classifier_head(key, n_classes, input_dim, hidden_dims):
    keys = jax.random.split(key, len(n_classes))
    return [init_classifier_head(k, nc, input_dim, hidden_dims)
            for k, nc in zip(keys, n_classes)]


def prepare_fused_params(per_head_params, input_dim, hidden_dims, n_classes):
    """Pack all heads' weights into fused, pre-transposed, lane-padded bf16 matrices.

    Layer 0 : heads concatenated along the output dim, input rows padded to 128.
    Layer j>0 / final : block-diagonal (each head only sees its own hidden acts).
    Zero padding keeps padded columns exactly zero through bias (=0) and ReLU.
    Returns (w0, w_rest_stack, biases, W, in_pad, class_offsets).
    """
    n_heads = len(per_head_params)
    L = len(hidden_dims) + 1
    concat_widths = [n_heads * d for d in hidden_dims] + [int(sum(n_classes))]
    W = max(_round_up(w, LANE) for w in concat_widths)
    in_pad = _round_up(input_dim, LANE)

    class_offsets = []
    off = 0
    for nc in n_classes:
        class_offsets.append(off)
        off += int(nc)

    biases = jnp.zeros((L, W), jnp.float32)
    w_list = []
    for j in range(L):
        in_dim_j = in_pad if j == 0 else W
        wj = jnp.zeros((in_dim_j, W), jnp.float32)
        for h in range(n_heads):
            w_h, b_h = per_head_params[h][j]        # (out, in), (out,)
            out_h, in_h = w_h.shape
            in_off = 0 if j == 0 else h * hidden_dims[j - 1]
            out_off = (h * hidden_dims[j]) if j < L - 1 else class_offsets[h]
            wj = wj.at[in_off:in_off + in_h, out_off:out_off + out_h].set(w_h.T)
            biases = biases.at[j, out_off:out_off + out_h].set(b_h)
        w_list.append(wj.astype(jnp.bfloat16))      # bf16 weights, f32 biases

    w0 = w_list[0]
    w_rest = jnp.stack(w_list[1:], axis=0) if L > 1 else None
    return w0, w_rest, biases, W, in_pad, tuple(class_offsets)


# ------------------------------ forward pass ------------------------------- #
def multi_classifier_head_forward(w0, w_rest, biases, labeled_input,
                                  unlabeled_input=None, *,
                                  n_classes, class_offsets):
    """Mirrors MultiClassifierHead.forward in eval mode:
    returns (logits_list, loss_dict) with loss_dict == {}.
    Order: [lab_head1, unlab_head1, lab_head2, unlab_head2, ...]."""
    if unlabeled_input is None:
        x = labeled_input
    else:
        x = jnp.concatenate([labeled_input, unlabeled_input], axis=0)

    y = fused_mlp_pallas(x, w0, w_rest, biases)     # (B_total, W), one kernel

    b_lab = labeled_input.shape[0]
    logits_list = []
    for nc, off in zip(n_classes, class_offsets):
        logits_list.append(y[:b_lab, off:off + nc])
        if unlabeled_input is not None:
            logits_list.append(y[b_lab:, off:off + nc])
    return logits_list, {}


# ------------------------------ pure-JAX ref -------------------------------- #
def _reference_head(params, x):
    """Mixed-precision reference matching the kernel's bf16-MXU/f32-accumulate."""
    h = x
    for li, (w, b) in enumerate(params):
        h = jnp.dot(h.astype(jnp.bfloat16), w.T.astype(jnp.bfloat16),
                    preferred_element_type=jnp.float32) + b
        if li < len(params) - 1:
            h = jnp.maximum(h, 0.0)
    return h


# ---------------------------------- main ----------------------------------- #
if __name__ == "__main__":
    # Small shapes consistent with the module's forward.
    n_classes = (4, 6)          # -> two ClassifierHead sub-modules
    input_dim = 32
    hidden_dims = [32, 16]
    batch_labeled = 8
    batch_unlabeled = 8

    root = jax.random.PRNGKey(0)
    k_params, k_lab, k_unlab = jax.random.split(root, 3)

    per_head_params = init_multi_classifier_head(
        k_params, n_classes, input_dim, hidden_dims)
    w0, w_rest, biases, out_w, in_pad, class_offsets = prepare_fused_params(
        per_head_params, input_dim, hidden_dims, n_classes)

    labeled_input = jax.random.normal(
        k_lab, (batch_labeled, input_dim), jnp.float32)
    unlabeled_input = jax.random.normal(
        k_unlab, (batch_unlabeled, input_dim), jnp.float32)

    forward = jax.jit(multi_classifier_head_forward,
                      static_argnames=("n_classes", "class_offsets"))

    logits_list, loss_dict = forward(
        w0, w_rest, biases, labeled_input, unlabeled_input,
        n_classes=n_classes, class_offsets=class_offsets)
    for lg in logits_list:
        jax.block_until_ready(lg)

    # Sanity: two heads x (labeled + unlabeled) = 4 logit tensors.
    expected_shapes = [
        (batch_labeled, n_classes[0]), (batch_unlabeled, n_classes[0]),
        (batch_labeled, n_classes[1]), (batch_unlabeled, n_classes[1]),
    ]
    assert [tuple(l.shape) for l in logits_list] == expected_shapes
    assert loss_dict == {}

    # Numerical check against the per-head mixed-precision reference.
    for hi, head_params in enumerate(per_head_params):
        ref_lab = _reference_head(head_params, labeled_input)
        ref_unlab = _reference_head(head_params, unlabeled_input)
        assert jnp.allclose(logits_list[2 * hi], ref_lab,
                            atol=1e-2, rtol=1e-2), f"head {hi} labeled mismatch"
        assert jnp.allclose(logits_list[2 * hi + 1], ref_unlab,
                            atol=1e-2, rtol=1e-2), f"head {hi} unlabeled mismatch"

    print("KERNEL_OK")
</pallas_src>

<mosaic_0001>
module attributes {stable_mosaic.version = 11 : i64} {
  func.func @_fused_mlp_kernel(%arg0: i32, %arg1: memref<16x128xf32, #tpu.memory_space<vmem>>, %arg2: memref<128x128xbf16, #tpu.memory_space<vmem>>, %arg3: memref<2x128x128xbf16, #tpu.memory_space<vmem>>, %arg4: memref<3x128xf32, #tpu.memory_space<vmem>>, %arg5: memref<16x128xf32, #tpu.memory_space<vmem>>) attributes {dimension_semantics = [#tpu.dimension_semantics<parallel>], iteration_bounds = array<i64: 1>, scalar_prefetch = 0 : i64, scratch_operands = 0 : i64, tpu.core_type = #tpu.core_type<tc>, window_params = [{transform_indices = @transform_0, window_bounds = array<i64: 16, 128>}, {pipeline_mode = #tpu.pipeline_mode<synchronous>, transform_indices = @transform_1, window_bounds = array<i64: 128, 128>}, {pipeline_mode = #tpu.pipeline_mode<synchronous>, transform_indices = @transform_2, window_bounds = array<i64: 2, 128, 128>}, {pipeline_mode = #tpu.pipeline_mode<synchronous>, transform_indices = @transform_3, window_bounds = array<i64: 3, 128>}, {transform_indices = @transform_4, window_bounds = array<i64: 16, 128>}]} {
    %c0 = arith.constant 0 : index
    %c0_0 = arith.constant 0 : index
    %0 = vector.load %arg4[%c0, %c0_0] : memref<3x128xf32, #tpu.memory_space<vmem>>, vector<3x128xf32>
    %c0_1 = arith.constant 0 : index
    %c0_2 = arith.constant 0 : index
    %1 = vector.load %arg1[%c0_1, %c0_2] : memref<16x128xf32, #tpu.memory_space<vmem>>, vector<16x128xf32>
    %2 = arith.truncf %1 : vector<16x128xf32> to vector<16x128xbf16>
    %c0_3 = arith.constant 0 : index
    %c0_4 = arith.constant 0 : index
    %3 = vector.load %arg2[%c0_3, %c0_4] : memref<128x128xbf16, #tpu.memory_space<vmem>>, vector<128x128xbf16>
    %cst = arith.constant dense<0.000000e+00> : vector<16x128xf32>
    %4 = tpu.matmul %2, %3, %cst {dimension_numbers = #tpu.dot_dimension_numbers<[1], [0], [0], [1], [0, 0, 1, 1], [], []>} : vector<16x128xbf16>, vector<128x128xbf16>, vector<16x128xf32> -> vector<16x128xf32>
    %5 = vector.extract_strided_slice %0 {offsets = [0, 0], sizes = [1, 128], strides = [1, 1]} : vector<3x128xf32> to vector<1x128xf32>
    %6 = vector.broadcast %5 : vector<1x128xf32> to vector<16x128xf32>
    %7 = arith.addf %4, %6 : vector<16x128xf32>
    %cst_5 = arith.constant 0.000000e+00 : f32
    %8 = vector.broadcast %cst_5 : f32 to vector<16x128xf32>
    %9 = arith.maximumf %7, %8 : vector<16x128xf32>
    %10 = arith.truncf %9 : vector<16x128xf32> to vector<16x128xbf16>
    %c0_6 = arith.constant 0 : index
    %c0_7 = arith.constant 0 : index
    %c0_8 = arith.constant 0 : index
    %11 = vector.load %arg3[%c0_6, %c0_7, %c0_8] : memref<2x128x128xbf16, #tpu.memory_space<vmem>>, vector<1x128x128xbf16>
    %12 = vector.shape_cast %11 : vector<1x128x128xbf16> to vector<128x128xbf16>
    %cst_9 = arith.constant dense<0.000000e+00> : vector<16x128xf32>
    %13 = tpu.matmul %10, %12, %cst_9 {dimension_numbers = #tpu.dot_dimension_numbers<[1], [0], [0], [1], [0, 0, 1, 1], [], []>} : vector<16x128xbf16>, vector<128x128xbf16>, vector<16x128xf32> -> vector<16x128xf32>
    %14 = vector.extract_strided_slice %0 {offsets = [1, 0], sizes = [1, 128], strides = [1, 1]} : vector<3x128xf32> to vector<1x128xf32>
    %15 = vector.broadcast %14 : vector<1x128xf32> to vector<16x128xf32>
    %16 = arith.addf %13, %15 : vector<16x128xf32>
    %cst_10 = arith.constant 0.000000e+00 : f32
    %17 = vector.broadcast %cst_10 : f32 to vector<16x128xf32>
    %18 = arith.maximumf %16, %17 : vector<16x128xf32>
    %19 = arith.truncf %18 : vector<16x128xf32> to vector<16x128xbf16>
    %c1 = arith.constant 1 : index
    %c0_11 = arith.constant 0 : index
    %c0_12 = arith.constant 0 : index
    %20 = vector.load %arg3[%c1, %c0_11, %c0_12] : memref<2x128x128xbf16, #tpu.memory_space<vmem>>, vector<1x128x128xbf16>
    %21 = vector.shape_cast %20 : vector<1x128x128xbf16> to vector<128x128xbf16>
    %cst_13 = arith.constant dense<0.000000e+00> : vector<16x128xf32>
    %22 = tpu.matmul %19, %21, %cst_13 {dimension_numbers = #tpu.dot_dimension_numbers<[1], [0], [0], [1], [0, 0, 1, 1], [], []>} : vector<16x128xbf16>, vector<128x128xbf16>, vector<16x128xf32> -> vector<16x128xf32>
    %23 = vector.extract_strided_slice %0 {offsets = [2, 0], sizes = [1, 128], strides = [1, 1]} : vector<3x128xf32> to vector<1x128xf32>
    %24 = vector.broadcast %23 : vector<1x128xf32> to vector<16x128xf32>
    %25 = arith.addf %22, %24 : vector<16x128xf32>
    %c0_14 = arith.constant 0 : index
    %c0_15 = arith.constant 0 : index
    %26 = vector.load %arg5[%c0_14, %c0_15] : memref<16x128xf32, #tpu.memory_space<vmem>>, vector<16x128xf32>
    tpu.vector_store %arg5[%c0_14, %c0_15], %25 {strides = array<i32>} : memref<16x128xf32, #tpu.memory_space<vmem>>, vector<16x128xf32>,
    return
  }
  func.func @transform_0(%arg0: i32) -> (i32, i32) {
    %c0_i32 = arith.constant 0 : i32
    %c0_i32_0 = arith.constant 0 : i32
    return %arg0, %c0_i32 : i32, i32
  }
  func.func @transform_1(%arg0: i32) -> (i32, i32) {
    %c0_i32 = arith.constant 0 : i32
    %c0_i32_0 = arith.constant 0 : i32
    %c0_i32_1 = arith.constant 0 : i32
    return %c0_i32, %c0_i32_0 : i32, i32
  }
  func.func @transform_2(%arg0: i32) -> (i32, i32, i32) {
    %c0_i32 = arith.constant 0 : i32
    %c0_i32_0 = arith.constant 0 : i32
    %c0_i32_1 = arith.constant 0 : i32
    %c0_i32_2 = arith.constant 0 : i32
    return %c0_i32, %c0_i32_0, %c0_i32_1 : i32, i32, i32
  }
  func.func @transform_3(%arg0: i32) -> (i32, i32) {
    %c0_i32 = arith.constant 0 : i32
    %c0_i32_0 = arith.constant 0 : i32
    %c0_i32_1 = arith.constant 0 : i32
    return %c0_i32, %c0_i32_0 : i32, i32
  }
  func.func @transform_4(%arg0: i32) -> (i32, i32) {
    %c0_i32 = arith.constant 0 : i32
    %c0_i32_0 = arith.constant 0 : i32
    return %arg0, %c0_i32 : i32, i32
  }
}

</mosaic_0001>

<llo_original>
// kernel: multi_classifier_head_forward.1
$region0: #{multi_classifier_head_forward.1}
  #allocation0 [shape = 'u32[]', space=smem, size = 0x4, offset = 0x4, fixed_abs, tag = 'smem constant byte address 0x4 - core index']
  #allocation1 [shape = 'u32[144,128]{1,0:T(1,128)}', space=vmem, size = 0x12000, scoped, tag = 'internal scratch']
  %s0 = inlined_call_operand.vmem [shape: f32[16,128], index: 0, kind: input, shape index: {}]
  %s1 = inlined_call_operand.hbm [shape: bf16[128,128], index: 1, kind: input, shape index: {}]
  %s2 = inlined_call_operand.hbm [shape: bf16[2,128,128], index: 2, kind: input, shape index: {}]
  %s3 = inlined_call_operand.vmem [shape: f32[3,128], index: 3, kind: input, shape index: {}]
  %s4 = inlined_call_operand.vmem [shape: f32[16,128], index: 4, kind: output, shape index: {}]
  %s5 = sld [smem:[#allocation0]]
  $region34: #{multi_classifier_head_forward.1} parent=0
    _
  %s7 = ssub.s32 1, %s5
  %s8 = scalar_select 0, %s7, %s5
  $region1: #{multi_classifier_head_forward.1} parent=0
    #allocation2 [shape = 'u8[32768]{0}', space=vmem, size = 0x8000, scoped, tag = 'input window, operand 1, single buffered']
    #allocation3 [shape = 's32[1]{0}', space=sflag, size = 0x4, scoped, tag = 'scoped memory for multi_classifier_head_forward.1']
    #allocation4 [shape = 'u8[65536]{0}', space=vmem, size = 0x10000, scoped, tag = 'input window, operand 2, single buffered']
    #allocation5 [shape = 's32[1]{0}', space=sflag, size = 0x4, scoped, tag = 'scoped memory for multi_classifier_head_forward.1']
    %9 = vsyncpa [#allocation3], 0
    %10 = vsyncpa [#allocation5], 0
    // Predicated region
    $region2: #{multi_classifier_head_forward.1} parent=1 // pred_check
      _
    $region3: #{multi_classifier_head_forward.1} parent=1 // pred_check_branch
      %12 = sbr.rel (0) target = $region5
    $region4: #{multi_classifier_head_forward.1} parent=1 // pred_region
      _
    $region5: #{multi_classifier_head_forward.1} parent=1 // pred_fallthru
      _
    // Predicated region
    $region6: #{multi_classifier_head_forward.1} parent=1 // pred_check
      _
    $region7: #{multi_classifier_head_forward.1} parent=1 // pred_check_branch
      %14 = sbr.rel (0) target = $region9
    $region8: #{multi_classifier_head_forward.1} parent=1 // pred_region
      %s16 = ssub.s32 1024, 1024
      %17 = vsyncadd [#allocation3], %s16
      %s18 = sshll.u32 [#allocation2], 4
      %s19 = int_to_ptr.vmem [resolvable:$true] %s18
      %24 = dma.hbm_to_vmem [thread:$0]  %s1, 1024, %s19, [#allocation3], 64, 64, 4
    $region9: #{multi_classifier_head_forward.1} parent=1 // pred_fallthru
      _
    // Predicated region
    $region10: #{multi_classifier_head_forward.1} parent=1 // pred_check
      _
    $region11: #{multi_classifier_head_forward.1} parent=1 // pred_check_branch
      %26 = sbr.rel (0) target = $region13
    $region12: #{multi_classifier_head_forward.1} parent=1 // pred_region
      %s28 = ssub.s32 2048, 2048
      %29 = vsyncadd [#allocation5], %s28
      %s30 = sshll.u32 [#allocation4], 4
      %s31 = int_to_ptr.vmem [resolvable:$true] %s30
      %36 = dma.hbm_to_vmem [thread:$0]  %s2, 2048, %s31, [#allocation5], 64, 64, 4
    $region13: #{multi_classifier_head_forward.1} parent=1 // pred_fallthru
      _
    // Predicated region
    $region14: #{multi_classifier_head_forward.1} parent=1 // pred_check
      _
    $region15: #{multi_classifier_head_forward.1} parent=1 // pred_check_branch
      %38 = sbr.rel (0) target = $region17
    $region16: #{multi_classifier_head_forward.1} parent=1 // pred_region
      _
    $region17: #{multi_classifier_head_forward.1} parent=1 // pred_fallthru
      _
    // Predicated region
    $region18: #{multi_classifier_head_forward.1} parent=1 // pred_check
      _
    $region19: #{multi_classifier_head_forward.1} parent=1 // pred_check_branch
      %40 = sbr.rel (0) target = $region21
    $region20: #{multi_classifier_head_forward.1} parent=1 // pred_region
      %41 = dma.done [#allocation3], 1024
    $region21: #{multi_classifier_head_forward.1} parent=1 // pred_fallthru
      _
    // Predicated region
    $region22: #{multi_classifier_head_forward.1} parent=1 // pred_check
      _
    $region23: #{multi_classifier_head_forward.1} parent=1 // pred_check_branch
      %43 = sbr.rel (0) target = $region25
    $region24: #{multi_classifier_head_forward.1} parent=1 // pred_region
      %44 = dma.done [#allocation5], 2048
    $region25: #{multi_classifier_head_forward.1} parent=1 // pred_fallthru
      _
    %v46 = vld [vmem:[%s3] sm:$0x7]
    %v47 = vld [vmem:[%s0] sm:$0xff]
    %v48 = vld [vmem:[%s0 + $0x8] sm:$0xff]
    %v49 = vpack.c.bf16 %v48, %v47
    %v50 = vld [vmem:[#allocation2] sm:$0xf]
    %v51 = vld [vmem:[#allocation2 + $0x4] sm:$0xf]
    %v52 = vld [vmem:[#allocation2 + $0x8] sm:$0xf]
    %v53 = vld [vmem:[#allocation2 + $0xc] sm:$0xf]
    %v54 = vld [vmem:[#allocation2 + $0x10] sm:$0xf]
    %v55 = vld [vmem:[#allocation2 + $0x14] sm:$0xf]
    %v56 = vld [vmem:[#allocation2 + $0x18] sm:$0xf]
    %v57 = vld [vmem:[#allocation2 + $0x1c] sm:$0xf]
    %v58 = vld [vmem:[#allocation2 + $0x20] sm:$0xf]
    %v59 = vld [vmem:[#allocation2 + $0x24] sm:$0xf]
    %v60 = vld [vmem:[#allocation2 + $0x28] sm:$0xf]
    %v61 = vld [vmem:[#allocation2 + $0x2c] sm:$0xf]
    %v62 = vld [vmem:[#allocation2 + $0x30] sm:$0xf]
    %v63 = vld [vmem:[#allocation2 + $0x34] sm:$0xf]
    %v64 = vld [vmem:[#allocation2 + $0x38] sm:$0xf]
    %v65 = vld [vmem:[#allocation2 + $0x3c] sm:$0xf]
    %v66 = vlaneseq
    %v67 = vshrl.u32 %v66, 7
    %v68 = vsub.s32 0, %v67
    %v69 = vrot.slane %v46, %v68
    %v86 = vunpack.c.l.b16 %v50
    %v87 = vunpack.c.l.b16 %v51
    %v88 = vunpack.c.l.b16 %v52
    %v89 = vunpack.c.l.b16 %v53
    %v90 = vunpack.c.l.b16 %v54
    %v91 = vunpack.c.l.b16 %v55
    %v92 = vunpack.c.l.b16 %v56
    %v93 = vunpack.c.l.b16 %v57
    %v94 = vunpack.c.l.b16 %v58
    %v95 = vunpack.c.l.b16 %v59
    %v96 = vunpack.c.l.b16 %v60
    %v97 = vunpack.c.l.b16 %v61
    %v98 = vunpack.c.l.b16 %v62
    %v99 = vunpack.c.l.b16 %v63
    %v100 = vunpack.c.l.b16 %v64
    %v101 = vunpack.c.l.b16 %v65
    %v102 = vpack.c.b16 %v87, %v86
    %v103 = vpack.c.b16 %v89, %v88
    %v104 = vpack.c.b16 %v91, %v90
    %v105 = vpack.c.b16 %v93, %v92
    %v106 = vpack.c.b16 %v95, %v94
    %v107 = vpack.c.b16 %v97, %v96
    %v108 = vpack.c.b16 %v99, %v98
    %v109 = vpack.c.b16 %v101, %v100
    %118 = vmatprep.subr.bf16.mxu0 0
    %119 = vmatpush1.bf16.msra.mxu0 %v102
    %120 = vmatprep.subr.bf16.mxu0 0
    %121 = vmatpush1.bf16.msra.mxu0 %v103
    %122 = vmatprep.subr.bf16.mxu0 0
    %123 = vmatpush1.bf16.msra.mxu0 %v104
    %124 = vmatprep.subr.bf16.mxu0 0
    %125 = vmatpush1.bf16.msra.mxu0 %v105
    %126 = vmatprep.subr.bf16.mxu0 0
    %127 = vmatpush1.bf16.msra.mxu0 %v106
    %128 = vmatprep.subr.bf16.mxu0 0
    %129 = vmatpush1.bf16.msra.mxu0 %v107
    %130 = vmatprep.subr.bf16.mxu0 0
    %131 = vmatpush1.bf16.msra.mxu0 %v108
    %132 = vmatprep.subr.bf16.mxu0 0
    %133 = vmatpush1.bf16.msra.mxu0 %v109
    %134 = vmatprep.subr.bf16.mxu0 0
    %135 = vmatpush1.bf16.msra.mxu0 0
    %136 = vmatprep.subr.bf16.mxu0 0
    %137 = vmatpush1.bf16.msra.mxu0 0
    %138 = vmatprep.subr.bf16.mxu0 0
    %139 = vmatpush1.bf16.msra.mxu0 0
    %140 = vmatprep.subr.bf16.mxu0 0
    %141 = vmatpush1.bf16.msra.mxu0 0
    %142 = vmatprep.subr.bf16.mxu0 0
    %143 = vmatpush1.bf16.msra.mxu0 0
    %144 = vmatprep.subr.bf16.mxu0 0
    %145 = vmatpush1.bf16.msra.mxu0 0
    %146 = vmatprep.subr.bf16.mxu0 0
    %147 = vmatpush1.bf16.msra.mxu0 0
    %148 = vmatprep.subr.bf16.mxu0 0
    %149 = vmatpush1.bf16.msra.mxu0 0
    %150 = vmatprep.mubr.bf16.mxu0 0
    %151 = vmatmul.mubr.bf16.gmra.mrb[0].mxu0 %v49
    %v152 = vpop.f32.mrb[0].mxu0
    %v153 = vadd.f32 %v69, %v152
    %v154 = vpop.f32.mrb[0].mxu0
    %v155 = vpop.f32.mrb[0].mxu0
    %v156 = vadd.f32 %v69, %v155
    %v157 = vpop.f32.mrb[0].mxu0
    %158 = vdwg.mxu0
    %v159 = vmax.f32 %v153, 0.0
    %v160 = vmax.f32 %v156, 0.0
    %v161 = vpack.c.bf16 %v160, %v159
    %v162 = vld [vmem:[#allocation4] sm:$0xf]
    %v163 = vld [vmem:[#allocation4 + $0x4] sm:$0xf]
    %v164 = vld [vmem:[#allocation4 + $0x8] sm:$0xf]
    %v165 = vld [vmem:[#allocation4 + $0xc] sm:$0xf]
    %v166 = vld [vmem:[#allocation4 + $0x10] sm:$0xf]
    %v167 = vld [vmem:[#allocation4 + $0x14] sm:$0xf]
    %v168 = vld [vmem:[#allocation4 + $0x18] sm:$0xf]
    %v169 = vld [vmem:[#allocation4 + $0x1c] sm:$0xf]
    %v170 = vld [vmem:[#allocation4 + $0x20] sm:$0xf]
    %v171 = vld [vmem:[#allocation4 + $0x24] sm:$0xf]
    %v172 = vld [vmem:[#allocation4 + $0x28] sm:$0xf]
    %v173 = vld [vmem:[#allocation4 + $0x2c] sm:$0xf]
    %v174 = vld [vmem:[#allocation4 + $0x30] sm:$0xf]
    %v175 = vld [vmem:[#allocation4 + $0x34] sm:$0xf]
    %v176 = vld [vmem:[#allocation4 + $0x38] sm:$0xf]
    %v177 = vld [vmem:[#allocation4 + $0x3c] sm:$0xf]
    %v178 = vlaneseq
    %v179 = vshrl.u32 %v178, 7
    %v180 = vsub.s32 1, %v179
    %v181 = vrot.slane %v46, %v180
    %v198 = vunpack.c.l.b16 %v162
    %v199 = vunpack.c.l.b16 %v163
    %v200 = vunpack.c.l.b16 %v164
    %v201 = vunpack.c.l.b16 %v165
    %v202 = vunpack.c.l.b16 %v166
    %v203 = vunpack.c.l.b16 %v167
    %v204 = vunpack.c.l.b16 %v168
    %v205 = vunpack.c.l.b16 %v169
    %v206 = vunpack.c.l.b16 %v170
    %v207 = vunpack.c.l.b16 %v171
    %v208 = vunpack.c.l.b16 %v172
    %v209 = vunpack.c.l.b16 %v173
    %v210 = vunpack.c.l.b16 %v174
    %v211 = vunpack.c.l.b16 %v175
    %v212 = vunpack.c.l.b16 %v176
    %v213 = vunpack.c.l.b16 %v177
    %v214 = vpack.c.b16 %v199, %v198
    %v215 = vpack.c.b16 %v201, %v200
    %v216 = vpack.c.b16 %v203, %v202
    %v217 = vpack.c.b16 %v205, %v204
    %v218 = vpack.c.b16 %v207, %v206
    %v219 = vpack.c.b16 %v209, %v208
    %v220 = vpack.c.b16 %v211, %v210
    %v221 = vpack.c.b16 %v213, %v212
    %230 = vmatprep.subr.bf16.mxu0 0
    %231 = vmatpush1.bf16.msra.mxu0 %v214
    %232 = vmatprep.subr.bf16.mxu0 0
    %233 = vmatpush1.bf16.msra.mxu0 %v215
    %234 = vmatprep.subr.bf16.mxu0 0
    %235 = vmatpush1.bf16.msra.mxu0 %v216
    %236 = vmatprep.subr.bf16.mxu0 0
    %237 = vmatpush1.bf16.msra.mxu0 %v217
    %238 = vmatprep.subr.bf16.mxu0 0
    %239 = vmatpush1.bf16.msra.mxu0 %v218
    %240 = vmatprep.subr.bf16.mxu0 0
    %241 = vmatpush1.bf16.msra.mxu0 %v219
    %242 = vmatprep.subr.bf16.mxu0 0
    %243 = vmatpush1.bf16.msra.mxu0 %v220
    %244 = vmatprep.subr.bf16.mxu0 0
    %245 = vmatpush1.bf16.msra.mxu0 %v221
    %246 = vmatprep.subr.bf16.mxu0 0
    %247 = vmatpush1.bf16.msra.mxu0 0
    %248 = vmatprep.subr.bf16.mxu0 0
    %249 = vmatpush1.bf16.msra.mxu0 0
    %250 = vmatprep.subr.bf16.mxu0 0
    %251 = vmatpush1.bf16.msra.mxu0 0
    %252 = vmatprep.subr.bf16.mxu0 0
    %253 = vmatpush1.bf16.msra.mxu0 0
    %254 = vmatprep.subr.bf16.mxu0 0
    %255 = vmatpush1.bf16.msra.mxu0 0
    %256 = vmatprep.subr.bf16.mxu0 0
    %257 = vmatpush1.bf16.msra.mxu0 0
    %258 = vmatprep.subr.bf16.mxu0 0
    %259 = vmatpush1.bf16.msra.mxu0 0
    %260 = vmatprep.subr.bf16.mxu0 0
    %261 = vmatpush1.bf16.msra.mxu0 0
    %262 = vmatprep.mubr.bf16.mxu0 0
    %263 = vmatmul.mubr.bf16.gmra.mrb[0].mxu0 %v161
    %v264 = vpop.f32.mrb[0].mxu0
    %v265 = vadd.f32 %v181, %v264
    %v266 = vpop.f32.mrb[0].mxu0
    %v267 = vpop.f32.mrb[0].mxu0
    %v268 = vadd.f32 %v181, %v267
    %v269 = vpop.f32.mrb[0].mxu0
    %270 = vdwg.mxu0
    %v271 = vmax.f32 %v265, 0.0
    %v272 = vmax.f32 %v268, 0.0
    %v273 = vpack.c.bf16 %v272, %v271
    %s274 = scalar_lea.vmem [#allocation4], 64
    %v275 = vld [vmem:[%s274] sm:$0xf]
    %v276 = vld [vmem:[%s274 + $0x4] sm:$0xf]
    %v277 = vld [vmem:[%s274 + $0x8] sm:$0xf]
    %v278 = vld [vmem:[%s274 + $0xc] sm:$0xf]
    %v279 = vld [vmem:[%s274 + $0x10] sm:$0xf]
    %v280 = vld [vmem:[%s274 + $0x14] sm:$0xf]
    %v281 = vld [vmem:[%s274 + $0x18] sm:$0xf]
    %v282 = vld [vmem:[%s274 + $0x1c] sm:$0xf]
    %v283 = vld [vmem:[%s274 + $0x20] sm:$0xf]
    %v284 = vld [vmem:[%s274 + $0x24] sm:$0xf]
    %v285 = vld [vmem:[%s274 + $0x28] sm:$0xf]
    %v286 = vld [vmem:[%s274 + $0x2c] sm:$0xf]
    %v287 = vld [vmem:[%s274 + $0x30] sm:$0xf]
    %v288 = vld [vmem:[%s274 + $0x34] sm:$0xf]
    %v289 = vld [vmem:[%s274 + $0x38] sm:$0xf]
    %v290 = vld [vmem:[%s274 + $0x3c] sm:$0xf]
    %v291 = vlaneseq
    %v292 = vshrl.u32 %v291, 7
    %v293 = vsub.s32 2, %v292
    %v294 = vrot.slane %v46, %v293
    %v311 = vunpack.c.l.b16 %v275
    %v312 = vunpack.c.l.b16 %v276
    %v313 = vunpack.c.l.b16 %v277
    %v314 = vunpack.c.l.b16 %v278
    %v315 = vunpack.c.l.b16 %v279
    %v316 = vunpack.c.l.b16 %v280
    %v317 = vunpack.c.l.b16 %v281
    %v318 = vunpack.c.l.b16 %v282
    %v319 = vunpack.c.l.b16 %v283
    %v320 = vunpack.c.l.b16 %v284
    %v321 = vunpack.c.l.b16 %v285
    %v322 = vunpack.c.l.b16 %v286
    %v323 = vunpack.c.l.b16 %v287
    %v324 = vunpack.c.l.b16 %v288
    %v325 = vunpack.c.l.b16 %v289
    %v326 = vunpack.c.l.b16 %v290
    %v327 = vpack.c.b16 %v312, %v311
    %v328 = vpack.c.b16 %v314, %v313
    %v329 = vpack.c.b16 %v316, %v315
    %v330 = vpack.c.b16 %v318, %v317
    %v331 = vpack.c.b16 %v320, %v319
    %v332 = vpack.c.b16 %v322, %v321
    %v333 = vpack.c.b16 %v324, %v323
    %v334 = vpack.c.b16 %v326, %v325
    %343 = vmatprep.subr.bf16.mxu0 0
    %344 = vmatpush1.bf16.msra.mxu0 %v327
    %345 = vmatprep.subr.bf16.mxu0 0
    %346 = vmatpush1.bf16.msra.mxu0 %v328
    %347 = vmatprep.subr.bf16.mxu0 0
    %348 = vmatpush1.bf16.msra.mxu0 %v329
    %349 = vmatprep.subr.bf16.mxu0 0
    %350 = vmatpush1.bf16.msra.mxu0 %v330
    %351 = vmatprep.subr.bf16.mxu0 0
    %352 = vmatpush1.bf16.msra.mxu0 %v331
    %353 = vmatprep.subr.bf16.mxu0 0
    %354 = vmatpush1.bf16.msra.mxu0 %v332
    %355 = vmatprep.subr.bf16.mxu0 0
    %356 = vmatpush1.bf16.msra.mxu0 %v333
    %357 = vmatprep.subr.bf16.mxu0 0
    %358 = vmatpush1.bf16.msra.mxu0 %v334
    %359 = vmatprep.subr.bf16.mxu0 0
    %360 = vmatpush1.bf16.msra.mxu0 0
    %361 = vmatprep.subr.bf16.mxu0 0
    %362 = vmatpush1.bf16.msra.mxu0 0
    %363 = vmatprep.subr.bf16.mxu0 0
    %364 = vmatpush1.bf16.msra.mxu0 0
    %365 = vmatprep.subr.bf16.mxu0 0
    %366 = vmatpush1.bf16.msra.mxu0 0
    %367 = vmatprep.subr.bf16.mxu0 0
    %368 = vmatpush1.bf16.msra.mxu0 0
    %369 = vmatprep.subr.bf16.mxu0 0
    %370 = vmatpush1.bf16.msra.mxu0 0
    %371 = vmatprep.subr.bf16.mxu0 0
    %372 = vmatpush1.bf16.msra.mxu0 0
    %373 = vmatprep.subr.bf16.mxu0 0
    %374 = vmatpush1.bf16.msra.mxu0 0
    %375 = vmatprep.mubr.bf16.mxu0 0
    %376 = vmatmul.mubr.bf16.gmra.mrb[0].mxu0 %v273
    %v377 = vpop.f32.mrb[0].mxu0
    %v378 = vadd.f32 %v294, %v377
    %v379 = vpop.f32.mrb[0].mxu0
    %v380 = vpop.f32.mrb[0].mxu0
    %v381 = vadd.f32 %v294, %v380
    %v382 = vpop.f32.mrb[0].mxu0
    %383 = vdwg.mxu0
    %384 = vst [vmem:[%s4] sm:$0xff] %v378
    %385 = vst [vmem:[%s4 + $0x8] sm:$0xff] %v381
    // Predicated region
    $region26: #{multi_classifier_head_forward.1} parent=1 // pred_check
      _
    $region27: #{multi_classifier_head_forward.1} parent=1 // pred_check_branch
      %387 = sbr.rel (0) target = $region29
    $region28: #{multi_classifier_head_forward.1} parent=1 // pred_region
      _
    $region29: #{multi_classifier_head_forward.1} parent=1 // pred_fallthru
      _
    // Predicated region
    $region30: #{multi_classifier_head_forward.1} parent=1 // pred_check
      _
    $region31: #{multi_classifier_head_forward.1} parent=1 // pred_check_branch
      %389 = sbr.rel (0) target = $region33
    $region32: #{multi_classifier_head_forward.1} parent=1 // pred_region
      _
    $region33: #{multi_classifier_head_forward.1} parent=1 // pred_fallthru
      _
    %390 = vsyncpa [#allocation3], 1
    %391 = vsyncpa [#allocation5], 1

</llo_original>
